<compile_context>
chip_gen: v6e
topology: v6e:2x2x1
jax: 0.10.0
libtpu: 0.0.40
codegen_flags: <defaults>
</compile_context>

<pallas_src>
import functools

import jax
import jax.numpy as jnp
from jax import lax
from jax.experimental import pallas as pl
from jax.experimental.pallas import tpu as pltpu


# ---------------------------------------------------------------------------
# Fused kernel
# ---------------------------------------------------------------------------
def _full_spec(shape):
    # Whole-array block; single grid point (no grid axes).
    return pl.BlockSpec(shape, lambda: (0,) * len(shape))


def _l2_normalize(x, eps=1e-12):
    # F.normalize(x, p=2, dim=1, eps): x / max(||x||_2, eps)
    #   == x * rsqrt(max(||x||^2, eps^2))  (rsqrt rides the EUP slot).
    ss = jnp.sum(x * x, axis=-1, keepdims=True)
    return x * lax.rsqrt(jnp.maximum(ss, eps * eps))


def _graph_conv_kernel(
    imat_ref,
    dis_emb_ref, dr_emb_ref,
    latent_ref, di_lw_ref, dr_lw_ref,
    di_filt_ref, dr_filt_ref,
    di_sim_ref, dr_sim_ref,
    dis_out_ref, drug_out_ref,
    *, n_hops,
):
    f32 = jnp.float32
    out_dtype = dis_out_ref.dtype

    # MXU operands kept at their incoming dtype (f32 or bf16); f32 accumulate.
    imat = imat_ref[...]          # (n_dis, n_dr)
    di_filt = di_filt_ref[...]    # (n_dis, n_dis)
    dr_filt = dr_filt_ref[...]    # (n_dr, n_dr)

    # Epilogue math (gates, normalize) in f32.
    dis_emb = dis_emb_ref[...].astype(f32)
    dr_emb = dr_emb_ref[...].astype(f32)
    di_sim = di_sim_ref[...].astype(f32)
    dr_sim = dr_sim_ref[...].astype(f32)

    # Loop-invariant gates, hoisted and folded:  agg*g + agg == agg*(g + 1).
    latent = latent_ref[...].astype(f32)
    gate_di = jnp.dot(di_lw_ref[...].astype(f32), latent,
                      preferred_element_type=f32) + 1.0
    gate_dr = jnp.dot(dr_lw_ref[...].astype(f32), latent,
                      preferred_element_type=f32) + 1.0

    dis_parts = [_l2_normalize(dis_emb), _l2_normalize(di_sim)]
    drug_parts = [_l2_normalize(dr_emb), _l2_normalize(dr_sim)]

    # n_hops is a static Python int -> unrolled at trace time.
    for _ in range(n_hops):
        dis_agg = jnp.dot(imat, dr_emb.astype(imat.dtype),
                          preferred_element_type=f32) * gate_di
        # Drug side contracts the disease axis of imat directly
        # (== interact_mat.T @ dis_emb) -- no transposed copy in HBM/VMEM.
        drug_agg = lax.dot_general(
            imat, dis_emb.astype(imat.dtype),
            dimension_numbers=(((0,), (0,)), ((), ())),
            preferred_element_type=f32) * gate_dr
        dis_emb, dr_emb = dis_agg, drug_agg

        di_sim = jnp.dot(di_filt, di_sim.astype(di_filt.dtype),
                         preferred_element_type=f32)
        dr_sim = jnp.dot(dr_filt, dr_sim.astype(dr_filt.dtype),
                         preferred_element_type=f32)

        dis_parts += [_l2_normalize(dis_emb), _l2_normalize(di_sim)]
        drug_parts += [_l2_normalize(dr_emb), _l2_normalize(dr_sim)]

    # One lane-dense store per output slab (no 32-lane masked column writes).
    dis_out_ref[...] = jnp.concatenate(dis_parts, axis=-1).astype(out_dtype)
    drug_out_ref[...] = jnp.concatenate(drug_parts, axis=-1).astype(out_dtype)


# ---------------------------------------------------------------------------
# Wrapper: one pallas_call for the whole forward pass
# ---------------------------------------------------------------------------
def _pick_vmem_limit(working_set_bytes):
    # Raise above the 32 MiB scoped default on 128-MiB parts (v5e/v6e) while
    # staying well under v7x's 64-MiB physical VMEM.
    try:
        physical = int(pltpu.get_tpu_info().vmem_capacity_bytes)
    except Exception:  # conservative fallback (works on every chip)
        physical = 64 * 1024 * 1024
    want = max(32 * 1024 * 1024, 3 * int(working_set_bytes) + (4 << 20))
    return min(want, (physical * 3) // 4)


def graph_conv_forward(
    n_hops,
    dis_emb,
    dr_emb,
    latent_emb,
    di_lantent_weight,
    dr_lantent_weight,
    interact_mat,
    interact_mat_t,
    dr_sim_filter_mat,
    di_sim_filter_mat,
    di_emb_sim,
    dr_emb_sim,
    *,
    matmul_dtype=None,
):
    # interact_mat_t kept for interface parity with the PyTorch module but
    # never read: the transposed contraction is computed in-kernel.
    del interact_mat_t

    n_dis, dim = dis_emb.shape
    n_dr = dr_emb.shape[0]
    n_factors = latent_emb.shape[0]
    out_cols = 2 * dim * (1 + n_hops)
    out_dtype = dis_emb.dtype

    if matmul_dtype is not None:
        # Halve HBM bytes of the dominant matrices; kernel accumulates in f32.
        interact_mat = interact_mat.astype(matmul_dtype)
        di_sim_filter_mat = di_sim_filter_mat.astype(matmul_dtype)
        dr_sim_filter_mat = dr_sim_filter_mat.astype(matmul_dtype)

    inputs = (
        interact_mat,
        dis_emb, dr_emb,
        latent_emb, di_lantent_weight, dr_lantent_weight,
        di_sim_filter_mat, dr_sim_filter_mat,
        di_emb_sim, dr_emb_sim,
    )

    in_bytes = sum(int(x.size) * x.dtype.itemsize for x in inputs)
    out_bytes = (n_dis + n_dr) * out_cols * jnp.dtype(out_dtype).itemsize

    # Advisory cost estimate for XLA's scheduler.
    flops = (
        2 * (n_dis + n_dr) * n_factors * dim
        + n_hops * (
            4 * n_dis * n_dr * dim          # two aggregation matmuls
            + 2 * n_dis * n_dis * dim       # disease similarity filter
            + 2 * n_dr * n_dr * dim         # drug similarity filter
            + 6 * (n_dis + n_dr) * dim      # gate mul + normalize (approx)
        )
    )
    transcendentals = 2 * (1 + n_hops) * (n_dis + n_dr)   # one rsqrt per stored row

    kernel = functools.partial(_graph_conv_kernel, n_hops=n_hops)
    return pl.pallas_call(
        kernel,
        out_shape=(
            jax.ShapeDtypeStruct((n_dis, out_cols), out_dtype),
            jax.ShapeDtypeStruct((n_dr, out_cols), out_dtype),
        ),
        in_specs=[_full_spec(x.shape) for x in inputs],
        out_specs=(
            _full_spec((n_dis, out_cols)),
            _full_spec((n_dr, out_cols)),
        ),
        cost_estimate=pl.CostEstimate(
            flops=int(flops),
            transcendentals=int(transcendentals),
            bytes_accessed=int(in_bytes + out_bytes),
        ),
        compiler_params=pltpu.CompilerParams(
            vmem_limit_bytes=_pick_vmem_limit(in_bytes + out_bytes)),
    )(*inputs)


# ---------------------------------------------------------------------------
# Pure-JAX reference (original PyTorch formulation) for correctness check
# ---------------------------------------------------------------------------
def _ref_normalize(x, eps=1e-12):
    n = jnp.sqrt(jnp.sum(x * x, axis=-1, keepdims=True))
    return x / jnp.maximum(n, eps)


def _ref_forward(n_hops, dis_emb, dr_emb, latent_emb, di_lw, dr_lw,
                 imat, imat_t, dr_filt, di_filt, di_sim, dr_sim):
    dis_res = [_ref_normalize(dis_emb), _ref_normalize(di_sim)]
    drug_res = [_ref_normalize(dr_emb), _ref_normalize(dr_sim)]
    for _ in range(n_hops):
        dis_agg = imat @ dr_emb
        dis_agg = dis_agg * (di_lw @ latent_emb) + dis_agg
        drug_agg = imat_t @ dis_emb
        drug_agg = drug_agg * (dr_lw @ latent_emb) + drug_agg
        dis_emb, dr_emb = dis_agg, drug_agg
        di_sim = di_filt @ di_sim
        dr_sim = dr_filt @ dr_sim
        dis_res += [_ref_normalize(dis_emb), _ref_normalize(di_sim)]
        drug_res += [_ref_normalize(dr_emb), _ref_normalize(dr_sim)]
    return jnp.concatenate(dis_res, -1), jnp.concatenate(drug_res, -1)


# ---------------------------------------------------------------------------
if __name__ == "__main__":
    # Small deterministic shapes consistent with the module's forward signature.
    n_diseases = 16
    n_drugs = 8
    n_factors = 4
    dim = 32
    n_hops = 2

    key = jax.random.PRNGKey(0)
    keys = jax.random.split(key, 10)

    dis_emb = jax.random.normal(keys[0], (n_diseases, dim), jnp.float32)
    dr_emb = jax.random.normal(keys[1], (n_drugs, dim), jnp.float32)
    latent_emb = jax.random.normal(keys[2], (n_factors, dim), jnp.float32)
    di_lantent_weight = jax.random.normal(keys[3], (n_diseases, n_factors), jnp.float32) * 0.1
    dr_lantent_weight = jax.random.normal(keys[4], (n_drugs, n_factors), jnp.float32) * 0.1
    interact_mat = jax.random.normal(keys[5], (n_diseases, n_drugs), jnp.float32) * 0.1
    interact_mat_t = interact_mat.T   # interface parity only; kernel ignores it
    dr_sim_filter_mat = jax.random.normal(keys[6], (n_drugs, n_drugs), jnp.float32) * 0.1
    di_sim_filter_mat = jax.random.normal(keys[7], (n_diseases, n_diseases), jnp.float32) * 0.1
    di_emb_sim = jax.random.normal(keys[8], (n_diseases, dim), jnp.float32)
    dr_emb_sim = jax.random.normal(keys[9], (n_drugs, dim), jnp.float32)

    args = (dis_emb, dr_emb, latent_emb, di_lantent_weight, dr_lantent_weight,
            interact_mat, interact_mat_t, dr_sim_filter_mat, di_sim_filter_mat,
            di_emb_sim, dr_emb_sim)

    ref_dis, ref_drug = _ref_forward(n_hops, *args)

    # f32 path: exact semantics of the original module.
    fwd = jax.jit(functools.partial(graph_conv_forward, n_hops))
    dis_res_emb, drug_res_emb = fwd(*args)
    jax.block_until_ready((dis_res_emb, drug_res_emb))
    assert dis_res_emb.shape == (n_diseases, 2 * dim * (1 + n_hops))
    assert drug_res_emb.shape == (n_drugs, 2 * dim * (1 + n_hops))
    assert jnp.allclose(dis_res_emb, ref_dis, atol=1e-4, rtol=1e-4)
    assert jnp.allclose(drug_res_emb, ref_drug, atol=1e-4, rtol=1e-4)

    # bf16-MXU-operand path: halves HBM bytes of the dominant matrices while
    # accumulating in f32 and keeping the f32 epilogue.
    fwd_bf16 = jax.jit(functools.partial(graph_conv_forward, n_hops,
                                         matmul_dtype=jnp.bfloat16))
    dis_bf, drug_bf = fwd_bf16(*args)
    jax.block_until_ready((dis_bf, drug_bf))
    assert jnp.allclose(dis_bf, ref_dis, atol=5e-2, rtol=5e-2)
    assert jnp.allclose(drug_bf, ref_drug, atol=5e-2, rtol=5e-2)

    print("KERNEL_OK")
</pallas_src>

<mosaic_0001>
module attributes {stable_mosaic.version = 11 : i64} {
  func.func @_graph_conv_kernel(%arg0: memref<16x8xf32, #tpu.memory_space<vmem>>, %arg1: memref<16x32xf32, #tpu.memory_space<vmem>>, %arg2: memref<8x32xf32, #tpu.memory_space<vmem>>, %arg3: memref<4x32xf32, #tpu.memory_space<vmem>>, %arg4: memref<16x4xf32, #tpu.memory_space<vmem>>, %arg5: memref<8x4xf32, #tpu.memory_space<vmem>>, %arg6: memref<16x16xf32, #tpu.memory_space<vmem>>, %arg7: memref<8x8xf32, #tpu.memory_space<vmem>>, %arg8: memref<16x32xf32, #tpu.memory_space<vmem>>, %arg9: memref<8x32xf32, #tpu.memory_space<vmem>>, %arg10: memref<16x192xf32, #tpu.memory_space<vmem>>, %arg11: memref<8x192xf32, #tpu.memory_space<vmem>>) attributes {dimension_semantics = [], scalar_prefetch = 0 : i64, scratch_operands = 0 : i64, tpu.core_type = #tpu.core_type<tc>} {
    %c0 = arith.constant 0 : index
    %c0_0 = arith.constant 0 : index
    %0 = vector.load %arg0[%c0, %c0_0] : memref<16x8xf32, #tpu.memory_space<vmem>>, vector<16x8xf32>
    %c0_1 = arith.constant 0 : index
    %c0_2 = arith.constant 0 : index
    %1 = vector.load %arg6[%c0_1, %c0_2] : memref<16x16xf32, #tpu.memory_space<vmem>>, vector<16x16xf32>
    %c0_3 = arith.constant 0 : index
    %c0_4 = arith.constant 0 : index
    %2 = vector.load %arg7[%c0_3, %c0_4] : memref<8x8xf32, #tpu.memory_space<vmem>>, vector<8x8xf32>
    %c0_5 = arith.constant 0 : index
    %c0_6 = arith.constant 0 : index
    %3 = vector.load %arg1[%c0_5, %c0_6] : memref<16x32xf32, #tpu.memory_space<vmem>>, vector<16x32xf32>
    %c0_7 = arith.constant 0 : index
    %c0_8 = arith.constant 0 : index
    %4 = vector.load %arg2[%c0_7, %c0_8] : memref<8x32xf32, #tpu.memory_space<vmem>>, vector<8x32xf32>
    %c0_9 = arith.constant 0 : index
    %c0_10 = arith.constant 0 : index
    %5 = vector.load %arg8[%c0_9, %c0_10] : memref<16x32xf32, #tpu.memory_space<vmem>>, vector<16x32xf32>
    %c0_11 = arith.constant 0 : index
    %c0_12 = arith.constant 0 : index
    %6 = vector.load %arg9[%c0_11, %c0_12] : memref<8x32xf32, #tpu.memory_space<vmem>>, vector<8x32xf32>
    %c0_13 = arith.constant 0 : index
    %c0_14 = arith.constant 0 : index
    %7 = vector.load %arg3[%c0_13, %c0_14] : memref<4x32xf32, #tpu.memory_space<vmem>>, vector<4x32xf32>
    %c0_15 = arith.constant 0 : index
    %c0_16 = arith.constant 0 : index
    %8 = vector.load %arg4[%c0_15, %c0_16] : memref<16x4xf32, #tpu.memory_space<vmem>>, vector<16x4xf32>
    %cst = arith.constant dense<0.000000e+00> : vector<16x32xf32>
    %9 = tpu.matmul %8, %7, %cst {dimension_numbers = #tpu.dot_dimension_numbers<[1], [0], [0], [1], [0, 0, 1, 1], [], []>} : vector<16x4xf32>, vector<4x32xf32>, vector<16x32xf32> -> vector<16x32xf32>
    %cst_17 = arith.constant 1.000000e+00 : f32
    %10 = vector.broadcast %cst_17 : f32 to vector<16x32xf32>
    %11 = arith.addf %9, %10 : vector<16x32xf32>
    %c0_18 = arith.constant 0 : index
    %c0_19 = arith.constant 0 : index
    %12 = vector.load %arg5[%c0_18, %c0_19] : memref<8x4xf32, #tpu.memory_space<vmem>>, vector<8x4xf32>
    %cst_20 = arith.constant dense<0.000000e+00> : vector<8x32xf32>
    %13 = tpu.matmul %12, %7, %cst_20 {dimension_numbers = #tpu.dot_dimension_numbers<[1], [0], [0], [1], [0, 0, 1, 1], [], []>} : vector<8x4xf32>, vector<4x32xf32>, vector<8x32xf32> -> vector<8x32xf32>
    %cst_21 = arith.constant 1.000000e+00 : f32
    %14 = vector.broadcast %cst_21 : f32 to vector<8x32xf32>
    %15 = arith.addf %13, %14 : vector<8x32xf32>
    %16 = arith.mulf %3, %3 : vector<16x32xf32>
    %cst_22 = arith.constant dense<0.000000e+00> : vector<16xf32>
    %17 = vector.multi_reduction <add>, %16, %cst_22 [1] : vector<16x32xf32> to vector<16xf32>
    %18 = vector.shape_cast %17 : vector<16xf32> to vector<16x1xf32>
    %cst_23 = arith.constant 1.000000e-24 : f32
    %19 = vector.broadcast %cst_23 : f32 to vector<16x1xf32>
    %20 = arith.maximumf %18, %19 : vector<16x1xf32>
    %21 = math.rsqrt %20 : vector<16x1xf32>
    %22 = vector.broadcast %21 : vector<16x1xf32> to vector<16x32xf32>
    %23 = arith.mulf %3, %22 : vector<16x32xf32>
    %24 = arith.mulf %5, %5 : vector<16x32xf32>
    %cst_24 = arith.constant dense<0.000000e+00> : vector<16xf32>
    %25 = vector.multi_reduction <add>, %24, %cst_24 [1] : vector<16x32xf32> to vector<16xf32>
    %26 = vector.shape_cast %25 : vector<16xf32> to vector<16x1xf32>
    %cst_25 = arith.constant 1.000000e-24 : f32
    %27 = vector.broadcast %cst_25 : f32 to vector<16x1xf32>
    %28 = arith.maximumf %26, %27 : vector<16x1xf32>
    %29 = math.rsqrt %28 : vector<16x1xf32>
    %30 = vector.broadcast %29 : vector<16x1xf32> to vector<16x32xf32>
    %31 = arith.mulf %5, %30 : vector<16x32xf32>
    %32 = arith.mulf %4, %4 : vector<8x32xf32>
    %cst_26 = arith.constant dense<0.000000e+00> : vector<8xf32>
    %33 = vector.multi_reduction <add>, %32, %cst_26 [1] : vector<8x32xf32> to vector<8xf32>
    %34 = vector.shape_cast %33 : vector<8xf32> to vector<8x1xf32>
    %cst_27 = arith.constant 1.000000e-24 : f32
    %35 = vector.broadcast %cst_27 : f32 to vector<8x1xf32>
    %36 = arith.maximumf %34, %35 : vector<8x1xf32>
    %37 = math.rsqrt %36 : vector<8x1xf32>
    %38 = vector.broadcast %37 : vector<8x1xf32> to vector<8x32xf32>
    %39 = arith.mulf %4, %38 : vector<8x32xf32>
    %40 = arith.mulf %6, %6 : vector<8x32xf32>
    %cst_28 = arith.constant dense<0.000000e+00> : vector<8xf32>
    %41 = vector.multi_reduction <add>, %40, %cst_28 [1] : vector<8x32xf32> to vector<8xf32>
    %42 = vector.shape_cast %41 : vector<8xf32> to vector<8x1xf32>
    %cst_29 = arith.constant 1.000000e-24 : f32
    %43 = vector.broadcast %cst_29 : f32 to vector<8x1xf32>
    %44 = arith.maximumf %42, %43 : vector<8x1xf32>
    %45 = math.rsqrt %44 : vector<8x1xf32>
    %46 = vector.broadcast %45 : vector<8x1xf32> to vector<8x32xf32>
    %47 = arith.mulf %6, %46 : vector<8x32xf32>
    %cst_30 = arith.constant dense<0.000000e+00> : vector<16x32xf32>
    %48 = tpu.matmul %0, %4, %cst_30 {dimension_numbers = #tpu.dot_dimension_numbers<[1], [0], [0], [1], [0, 0, 1, 1], [], []>} : vector<16x8xf32>, vector<8x32xf32>, vector<16x32xf32> -> vector<16x32xf32>
    %49 = arith.mulf %48, %11 : vector<16x32xf32>
    %cst_31 = arith.constant dense<0.000000e+00> : vector<8x32xf32>
    %50 = tpu.matmul %0, %3, %cst_31 {dimension_numbers = #tpu.dot_dimension_numbers<[0], [0], [1], [1], [0, 1, 1, 1], [], []>} : vector<16x8xf32>, vector<16x32xf32>, vector<8x32xf32> -> vector<8x32xf32>
    %51 = arith.mulf %50, %15 : vector<8x32xf32>
    %cst_32 = arith.constant dense<0.000000e+00> : vector<16x32xf32>
    %52 = tpu.matmul %1, %5, %cst_32 {dimension_numbers = #tpu.dot_dimension_numbers<[1], [0], [0], [1], [0, 0, 1, 1], [], []>} : vector<16x16xf32>, vector<16x32xf32>, vector<16x32xf32> -> vector<16x32xf32>
    %cst_33 = arith.constant dense<0.000000e+00> : vector<8x32xf32>
    %53 = tpu.matmul %2, %6, %cst_33 {dimension_numbers = #tpu.dot_dimension_numbers<[1], [0], [0], [1], [0, 0, 1, 1], [], []>} : vector<8x8xf32>, vector<8x32xf32>, vector<8x32xf32> -> vector<8x32xf32>
    %54 = arith.mulf %49, %49 : vector<16x32xf32>
    %cst_34 = arith.constant dense<0.000000e+00> : vector<16xf32>
    %55 = vector.multi_reduction <add>, %54, %cst_34 [1] : vector<16x32xf32> to vector<16xf32>
    %56 = vector.shape_cast %55 : vector<16xf32> to vector<16x1xf32>
    %cst_35 = arith.constant 1.000000e-24 : f32
    %57 = vector.broadcast %cst_35 : f32 to vector<16x1xf32>
    %58 = arith.maximumf %56, %57 : vector<16x1xf32>
    %59 = math.rsqrt %58 : vector<16x1xf32>
    %60 = vector.broadcast %59 : vector<16x1xf32> to vector<16x32xf32>
    %61 = arith.mulf %49, %60 : vector<16x32xf32>
    %62 = arith.mulf %52, %52 : vector<16x32xf32>
    %cst_36 = arith.constant dense<0.000000e+00> : vector<16xf32>
    %63 = vector.multi_reduction <add>, %62, %cst_36 [1] : vector<16x32xf32> to vector<16xf32>
    %64 = vector.shape_cast %63 : vector<16xf32> to vector<16x1xf32>
    %cst_37 = arith.constant 1.000000e-24 : f32
    %65 = vector.broadcast %cst_37 : f32 to vector<16x1xf32>
    %66 = arith.maximumf %64, %65 : vector<16x1xf32>
    %67 = math.rsqrt %66 : vector<16x1xf32>
    %68 = vector.broadcast %67 : vector<16x1xf32> to vector<16x32xf32>
    %69 = arith.mulf %52, %68 : vector<16x32xf32>
    %70 = arith.mulf %51, %51 : vector<8x32xf32>
    %cst_38 = arith.constant dense<0.000000e+00> : vector<8xf32>
    %71 = vector.multi_reduction <add>, %70, %cst_38 [1] : vector<8x32xf32> to vector<8xf32>
    %72 = vector.shape_cast %71 : vector<8xf32> to vector<8x1xf32>
    %cst_39 = arith.constant 1.000000e-24 : f32
    %73 = vector.broadcast %cst_39 : f32 to vector<8x1xf32>
    %74 = arith.maximumf %72, %73 : vector<8x1xf32>
    %75 = math.rsqrt %74 : vector<8x1xf32>
    %76 = vector.broadcast %75 : vector<8x1xf32> to vector<8x32xf32>
    %77 = arith.mulf %51, %76 : vector<8x32xf32>
    %78 = arith.mulf %53, %53 : vector<8x32xf32>
    %cst_40 = arith.constant dense<0.000000e+00> : vector<8xf32>
    %79 = vector.multi_reduction <add>, %78, %cst_40 [1] : vector<8x32xf32> to vector<8xf32>
    %80 = vector.shape_cast %79 : vector<8xf32> to vector<8x1xf32>
    %cst_41 = arith.constant 1.000000e-24 : f32
    %81 = vector.broadcast %cst_41 : f32 to vector<8x1xf32>
    %82 = arith.maximumf %80, %81 : vector<8x1xf32>
    %83 = math.rsqrt %82 : vector<8x1xf32>
    %84 = vector.broadcast %83 : vector<8x1xf32> to vector<8x32xf32>
    %85 = arith.mulf %53, %84 : vector<8x32xf32>
    %cst_42 = arith.constant dense<0.000000e+00> : vector<16x32xf32>
    %86 = tpu.matmul %0, %51, %cst_42 {dimension_numbers = #tpu.dot_dimension_numbers<[1], [0], [0], [1], [0, 0, 1, 1], [], []>} : vector<16x8xf32>, vector<8x32xf32>, vector<16x32xf32> -> vector<16x32xf32>
    %87 = arith.mulf %86, %11 : vector<16x32xf32>
    %cst_43 = arith.constant dense<0.000000e+00> : vector<8x32xf32>
    %88 = tpu.matmul %0, %49, %cst_43 {dimension_numbers = #tpu.dot_dimension_numbers<[0], [0], [1], [1], [0, 1, 1, 1], [], []>} : vector<16x8xf32>, vector<16x32xf32>, vector<8x32xf32> -> vector<8x32xf32>
    %89 = arith.mulf %88, %15 : vector<8x32xf32>
    %cst_44 = arith.constant dense<0.000000e+00> : vector<16x32xf32>
    %90 = tpu.matmul %1, %52, %cst_44 {dimension_numbers = #tpu.dot_dimension_numbers<[1], [0], [0], [1], [0, 0, 1, 1], [], []>} : vector<16x16xf32>, vector<16x32xf32>, vector<16x32xf32> -> vector<16x32xf32>
    %cst_45 = arith.constant dense<0.000000e+00> : vector<8x32xf32>
    %91 = tpu.matmul %2, %53, %cst_45 {dimension_numbers = #tpu.dot_dimension_numbers<[1], [0], [0], [1], [0, 0, 1, 1], [], []>} : vector<8x8xf32>, vector<8x32xf32>, vector<8x32xf32> -> vector<8x32xf32>
    %92 = arith.mulf %87, %87 : vector<16x32xf32>
    %cst_46 = arith.constant dense<0.000000e+00> : vector<16xf32>
    %93 = vector.multi_reduction <add>, %92, %cst_46 [1] : vector<16x32xf32> to vector<16xf32>
    %94 = vector.shape_cast %93 : vector<16xf32> to vector<16x1xf32>
    %cst_47 = arith.constant 1.000000e-24 : f32
    %95 = vector.broadcast %cst_47 : f32 to vector<16x1xf32>
    %96 = arith.maximumf %94, %95 : vector<16x1xf32>
    %97 = math.rsqrt %96 : vector<16x1xf32>
    %98 = vector.broadcast %97 : vector<16x1xf32> to vector<16x32xf32>
    %99 = arith.mulf %87, %98 : vector<16x32xf32>
    %100 = arith.mulf %90, %90 : vector<16x32xf32>
    %cst_48 = arith.constant dense<0.000000e+00> : vector<16xf32>
    %101 = vector.multi_reduction <add>, %100, %cst_48 [1] : vector<16x32xf32> to vector<16xf32>
    %102 = vector.shape_cast %101 : vector<16xf32> to vector<16x1xf32>
    %cst_49 = arith.constant 1.000000e-24 : f32
    %103 = vector.broadcast %cst_49 : f32 to vector<16x1xf32>
    %104 = arith.maximumf %102, %103 : vector<16x1xf32>
    %105 = math.rsqrt %104 : vector<16x1xf32>
    %106 = vector.broadcast %105 : vector<16x1xf32> to vector<16x32xf32>
    %107 = arith.mulf %90, %106 : vector<16x32xf32>
    %108 = arith.mulf %89, %89 : vector<8x32xf32>
    %cst_50 = arith.constant dense<0.000000e+00> : vector<8xf32>
    %109 = vector.multi_reduction <add>, %108, %cst_50 [1] : vector<8x32xf32> to vector<8xf32>
    %110 = vector.shape_cast %109 : vector<8xf32> to vector<8x1xf32>
    %cst_51 = arith.constant 1.000000e-24 : f32
    %111 = vector.broadcast %cst_51 : f32 to vector<8x1xf32>
    %112 = arith.maximumf %110, %111 : vector<8x1xf32>
    %113 = math.rsqrt %112 : vector<8x1xf32>
    %114 = vector.broadcast %113 : vector<8x1xf32> to vector<8x32xf32>
    %115 = arith.mulf %89, %114 : vector<8x32xf32>
    %116 = arith.mulf %91, %91 : vector<8x32xf32>
    %cst_52 = arith.constant dense<0.000000e+00> : vector<8xf32>
    %117 = vector.multi_reduction <add>, %116, %cst_52 [1] : vector<8x32xf32> to vector<8xf32>
    %118 = vector.shape_cast %117 : vector<8xf32> to vector<8x1xf32>
    %cst_53 = arith.constant 1.000000e-24 : f32
    %119 = vector.broadcast %cst_53 : f32 to vector<8x1xf32>
    %120 = arith.maximumf %118, %119 : vector<8x1xf32>
    %121 = math.rsqrt %120 : vector<8x1xf32>
    %122 = vector.broadcast %121 : vector<8x1xf32> to vector<8x32xf32>
    %123 = arith.mulf %91, %122 : vector<8x32xf32>
    %124 = tpu.concatenate %23, %31, %61, %69, %99, %107 in 1 : vector<16x32xf32>, vector<16x32xf32>, vector<16x32xf32>, vector<16x32xf32>, vector<16x32xf32>, vector<16x32xf32> -> vector<16x192xf32>
    %c0_54 = arith.constant 0 : index
    %c0_55 = arith.constant 0 : index
    %125 = vector.load %arg10[%c0_54, %c0_55] : memref<16x192xf32, #tpu.memory_space<vmem>>, vector<16x192xf32>
    tpu.vector_store %arg10[%c0_54, %c0_55], %124 {strides = array<i32>} : memref<16x192xf32, #tpu.memory_space<vmem>>, vector<16x192xf32>,
    %126 = tpu.concatenate %39, %47, %77, %85, %115, %123 in 1 : vector<8x32xf32>, vector<8x32xf32>, vector<8x32xf32>, vector<8x32xf32>, vector<8x32xf32>, vector<8x32xf32> -> vector<8x192xf32>
    %c0_56 = arith.constant 0 : index
    %c0_57 = arith.constant 0 : index
    %127 = vector.load %arg11[%c0_56, %c0_57] : memref<8x192xf32, #tpu.memory_space<vmem>>, vector<8x192xf32>
    tpu.vector_store %arg11[%c0_56, %c0_57], %126 {strides = array<i32>} : memref<8x192xf32, #tpu.memory_space<vmem>>, vector<8x192xf32>,
    return
  }
}

</mosaic_0001>

<llo_original>
// kernel: graph_conv_forward.1
$region0: #{graph_conv_forward.1}
  #allocation0 [shape = 'u32[]', space=smem, size = 0x4, offset = 0x4, fixed_abs, tag = 'smem constant byte address 0x4 - core index']
  #allocation1 [shape = 'u32[144,128]{1,0:T(1,128)}', space=vmem, size = 0x12000, scoped, tag = 'internal scratch']
  %s0 = inlined_call_operand.vmem [shape: f32[16,8], index: 0, kind: input, shape index: {}]
  %s1 = inlined_call_operand.vmem [shape: f32[16,32], index: 1, kind: input, shape index: {}]
  %s2 = inlined_call_operand.vmem [shape: f32[8,32], index: 2, kind: input, shape index: {}]
  %s3 = inlined_call_operand.hbm [shape: f32[4,32], index: 3, kind: input, shape index: {}]
  %s4 = inlined_call_operand.vmem [shape: f32[16,4], index: 4, kind: input, shape index: {}]
  %s5 = inlined_call_operand.vmem [shape: f32[8,4], index: 5, kind: input, shape index: {}]
  %s6 = inlined_call_operand.vmem [shape: f32[16,16], index: 6, kind: input, shape index: {}]
  %s7 = inlined_call_operand.vmem [shape: f32[8,8], index: 7, kind: input, shape index: {}]
  %s8 = inlined_call_operand.vmem [shape: f32[16,32], index: 8, kind: input, shape index: {}]
  %s9 = inlined_call_operand.vmem [shape: f32[8,32], index: 9, kind: input, shape index: {}]
  %s10 = inlined_call_operand.hbm [shape: f32[16,192], index: 10, kind: output, shape index: {0}]
  %s11 = inlined_call_operand.hbm [shape: f32[8,192], index: 11, kind: output, shape index: {1}]
  %12 = xla_tuple %s10, %s11
  %s13 = sld [smem:[#allocation0]]
  $region62: #{graph_conv_forward.1} parent=0
    _
  %s15 = ssub.s32 1, %s13
  %s16 = scalar_select 0, %s15, %s13
  $region1: #{graph_conv_forward.1} parent=0
    #allocation2 [shape = 'u8[2048]{0}', space=vmem, size = 0x800, scoped, tag = 'input window, operand 3, single buffered']
    #allocation3 [shape = 's32[1]{0}', space=sflag, size = 0x4, scoped, tag = 'scoped memory for graph_conv_forward.1']
    #allocation4 [shape = 's32[1]{0}', space=sflag, size = 0x4, scoped, tag = 'scoped memory for graph_conv_forward.1']
    #allocation5 [shape = 'u8[16384]{0}', space=vmem, size = 0x4000, scoped, tag = 'output window, operand 0, single buffered']
    #allocation6 [shape = 'u8[8192]{0}', space=vmem, size = 0x2000, scoped, tag = 'output window, operand 1, single buffered']
    #allocation7 [shape = 's32[1]{0}', space=sflag, size = 0x4, scoped, tag = 'scoped memory for graph_conv_forward.1']
    %17 = vsyncpa [#allocation3], 0
    %18 = vsyncpa [#allocation4], 0
    %19 = vsyncpa [#allocation7], 0
    // Predicated region
    $region2: #{graph_conv_forward.1} parent=1 // pred_check
      _
    $region3: #{graph_conv_forward.1} parent=1 // pred_check_branch
      %21 = sbr.rel (0) target = $region5
    $region4: #{graph_conv_forward.1} parent=1 // pred_region
      _
    $region5: #{graph_conv_forward.1} parent=1 // pred_fallthru
      _
    // Predicated region
    $region6: #{graph_conv_forward.1} parent=1 // pred_check
      _
    $region7: #{graph_conv_forward.1} parent=1 // pred_check_branch
      %23 = sbr.rel (0) target = $region9
    $region8: #{graph_conv_forward.1} parent=1 // pred_region
      _
    $region9: #{graph_conv_forward.1} parent=1 // pred_fallthru
      _
    // Predicated region
    $region10: #{graph_conv_forward.1} parent=1 // pred_check
      _
    $region11: #{graph_conv_forward.1} parent=1 // pred_check_branch
      %25 = sbr.rel (0) target = $region13
    $region12: #{graph_conv_forward.1} parent=1 // pred_region
      _
    $region13: #{graph_conv_forward.1} parent=1 // pred_fallthru
      _
    // Predicated region
    $region14: #{graph_conv_forward.1} parent=1 // pred_check
      _
    $region15: #{graph_conv_forward.1} parent=1 // pred_check_branch
      %27 = sbr.rel (0) target = $region17
    $region16: #{graph_conv_forward.1} parent=1 // pred_region
      %s29 = ssub.s32 64, 64
      %30 = vsyncadd [#allocation3], %s29
      %s32 = sshll.u32 [#allocation2], 4
      %s33 = int_to_ptr.vmem [resolvable:$true] %s32
      %35 = dma.hbm_to_vmem [thread:$0]  %s3, 64, %s33, [#allocation3]
    $region17: #{graph_conv_forward.1} parent=1 // pred_fallthru
      _
    // Predicated region
    $region18: #{graph_conv_forward.1} parent=1 // pred_check
      _
    $region19: #{graph_conv_forward.1} parent=1 // pred_check_branch
      %37 = sbr.rel (0) target = $region21
    $region20: #{graph_conv_forward.1} parent=1 // pred_region
      _
    $region21: #{graph_conv_forward.1} parent=1 // pred_fallthru
      _
    // Predicated region
    $region22: #{graph_conv_forward.1} parent=1 // pred_check
      _
    $region23: #{graph_conv_forward.1} parent=1 // pred_check_branch
      %39 = sbr.rel (0) target = $region25
    $region24: #{graph_conv_forward.1} parent=1 // pred_region
      _
    $region25: #{graph_conv_forward.1} parent=1 // pred_fallthru
      _
    // Predicated region
    $region26: #{graph_conv_forward.1} parent=1 // pred_check
      _
    $region27: #{graph_conv_forward.1} parent=1 // pred_check_branch
      %41 = sbr.rel (0) target = $region29
    $region28: #{graph_conv_forward.1} parent=1 // pred_region
      _
    $region29: #{graph_conv_forward.1} parent=1 // pred_fallthru
      _
    // Predicated region
    $region30: #{graph_conv_forward.1} parent=1 // pred_check
      _
    $region31: #{graph_conv_forward.1} parent=1 // pred_check_branch
      %43 = sbr.rel (0) target = $region33
    $region32: #{graph_conv_forward.1} parent=1 // pred_region
      _
    $region33: #{graph_conv_forward.1} parent=1 // pred_fallthru
      _
    // Predicated region
    $region34: #{graph_conv_forward.1} parent=1 // pred_check
      _
    $region35: #{graph_conv_forward.1} parent=1 // pred_check_branch
      %45 = sbr.rel (0) target = $region37
    $region36: #{graph_conv_forward.1} parent=1 // pred_region
      _
    $region37: #{graph_conv_forward.1} parent=1 // pred_fallthru
      _
    // Predicated region
    $region38: #{graph_conv_forward.1} parent=1 // pred_check
      _
    $region39: #{graph_conv_forward.1} parent=1 // pred_check_branch
      %47 = sbr.rel (0) target = $region41
    $region40: #{graph_conv_forward.1} parent=1 // pred_region
      _
    $region41: #{graph_conv_forward.1} parent=1 // pred_fallthru
      _
    // Predicated region
    $region42: #{graph_conv_forward.1} parent=1 // pred_check
      _
    $region43: #{graph_conv_forward.1} parent=1 // pred_check_branch
      %49 = sbr.rel (0) target = $region45
    $region44: #{graph_conv_forward.1} parent=1 // pred_region
      %50 = dma.done [#allocation3], 64
    $region45: #{graph_conv_forward.1} parent=1 // pred_fallthru
      _
    %v51 = vld [vmem:[%s0] sm:$0xff]
    %v52 = vld [vmem:[%s0 + $0x8] sm:$0xff]
    %v53 = vld [vmem:[%s6] sm:$0xff]
    %v54 = vld [vmem:[%s6 + $0x8] sm:$0xff]
    %v55 = vld [vmem:[%s7] sm:$0xff]
    %v56 = vld [vmem:[%s1] sm:$0xff]
    %v57 = vld [vmem:[%s1 + $0x8] sm:$0xff]
    %v58 = vld [vmem:[%s2] sm:$0xff]
    %v59 = vld [vmem:[%s8] sm:$0xff]
    %v60 = vld [vmem:[%s8 + $0x8] sm:$0xff]
    %v61 = vld [vmem:[%s9] sm:$0xff]
    %v62 = vld [vmem:[#allocation2] sm:$0xf]
    %v63 = vld [vmem:[%s4] sm:$0xff]
    %v64 = vld [vmem:[%s4 + $0x8] sm:$0xff]
    %vm65 = vcmask 31744
    %v67 = vsel %vm65, %v63, 0
    %v70 = vsel %vm65, %v64, 0
    %vm72 = vcmask 1043456
    %v74 = vsel %vm72, %v62, 0
    %76 = vmatprep.subr.mxu0 0.0
    %77 = vmatpush1.msra.mxu0 0.0
    %78 = vmatprep.subr.mxu0 0.0
    %79 = vmatpush1.msra.mxu0 0.0
    %80 = vmatprep.subr.mxu0 0.0
    %81 = vmatpush1.msra.mxu0 0.0
    %82 = vmatprep.subr.mxu0 0.0
    %83 = vmatpush1.msra.mxu0 0.0
    %84 = vmatprep.subr.mxu0 0.0
    %85 = vmatpush1.msra.mxu0 0.0
    %86 = vmatprep.subr.mxu0 0.0
    %87 = vmatpush1.msra.mxu0 0.0
    %88 = vmatprep.subr.mxu0 0.0
    %89 = vmatpush1.msra.mxu0 0.0
    %90 = vmatprep.subr.mxu0 0.0
    %91 = vmatpush1.msra.mxu0 0.0
    %92 = vmatprep.subr.mxu0 0.0
    %93 = vmatpush1.msra.mxu0 0.0
    %94 = vmatprep.subr.mxu0 0.0
    %95 = vmatpush1.msra.mxu0 0.0
    %96 = vmatprep.subr.mxu0 0.0
    %97 = vmatpush1.msra.mxu0 0.0
    %98 = vmatprep.subr.mxu0 0.0
    %99 = vmatpush1.msra.mxu0 0.0
    %100 = vmatprep.subr.mxu0 0.0
    %101 = vmatpush1.msra.mxu0 0.0
    %102 = vmatprep.subr.mxu0 0.0
    %103 = vmatpush1.msra.mxu0 0.0
    %104 = vmatprep.subr.mxu0 0.0
    %105 = vmatpush1.msra.mxu0 0.0
    %106 = vmatprep.subr.mxu0 0.0
    %107 = vmatpush1.msra.mxu0 %v74
    %108 = vmatprep.subr.mxu0 0.0
    %109 = vmatpush2.msra.mxu0 0.0
    %110 = vmatprep.subr.mxu0 0.0
    %111 = vmatpush2.msra.mxu0 0.0
    %112 = vmatprep.subr.mxu0 0.0
    %113 = vmatpush2.msra.mxu0 0.0
    %114 = vmatprep.subr.mxu0 0.0
    %115 = vmatpush2.msra.mxu0 0.0
    %116 = vmatprep.subr.mxu0 0.0
    %117 = vmatpush2.msra.mxu0 0.0
    %118 = vmatprep.subr.mxu0 0.0
    %119 = vmatpush2.msra.mxu0 0.0
    %120 = vmatprep.subr.mxu0 0.0
    %121 = vmatpush2.msra.mxu0 0.0
    %122 = vmatprep.subr.mxu0 0.0
    %123 = vmatpush2.msra.mxu0 0.0
    %124 = vmatprep.subr.mxu0 0.0
    %125 = vmatpush2.msra.mxu0 0.0
    %126 = vmatprep.subr.mxu0 0.0
    %127 = vmatpush2.msra.mxu0 0.0
    %128 = vmatprep.subr.mxu0 0.0
    %129 = vmatpush2.msra.mxu0 0.0
    %130 = vmatprep.subr.mxu0 0.0
    %131 = vmatpush2.msra.mxu0 0.0
    %132 = vmatprep.subr.mxu0 0.0
    %133 = vmatpush2.msra.mxu0 0.0
    %134 = vmatprep.subr.mxu0 0.0
    %135 = vmatpush2.msra.mxu0 0.0
    %136 = vmatprep.subr.mxu0 0.0
    %137 = vmatpush2.msra.mxu0 0.0
    %138 = vmatprep.subr.mxu0 0.0
    %139 = vmatpush2.msra.mxu0 0.0
    %140 = vmatprep.mubr.f32.mxu0 0.0
    %141 = vmatmul.mubr.f32.gmra.mxu0 %v67
    %v142 = vpop.f32.mrf.mxu0
    %v143 = vadd.f32 1.0, %v142
    %v144 = vpop.f32.mrf.mxu0
    %145 = vmatprep.mubr.f32.mxu0 0.0
    %146 = vmatmul.mubr.f32.gmra.mxu0 %v70
    %v147 = vpop.f32.mrf.mxu0
    %v148 = vadd.f32 1.0, %v147
    %v149 = vpop.f32.mrf.mxu0
    %150 = vdwg.mxu0
    %v151 = vld [vmem:[%s5] sm:$0xff]
    %v153 = vsel %vm65, %v151, 0
    %155 = vmatprep.subr.mxu0 0.0
    %156 = vmatpush1.msra.mxu0 0.0
    %157 = vmatprep.subr.mxu0 0.0
    %158 = vmatpush1.msra.mxu0 0.0
    %159 = vmatprep.subr.mxu0 0.0
    %160 = vmatpush1.msra.mxu0 0.0
    %161 = vmatprep.subr.mxu0 0.0
    %162 = vmatpush1.msra.mxu0 0.0
    %163 = vmatprep.subr.mxu0 0.0
    %164 = vmatpush1.msra.mxu0 0.0
    %165 = vmatprep.subr.mxu0 0.0
    %166 = vmatpush1.msra.mxu0 0.0
    %167 = vmatprep.subr.mxu0 0.0
    %168 = vmatpush1.msra.mxu0 0.0
    %169 = vmatprep.subr.mxu0 0.0
    %170 = vmatpush1.msra.mxu0 0.0
    %171 = vmatprep.subr.mxu0 0.0
    %172 = vmatpush1.msra.mxu0 0.0
    %173 = vmatprep.subr.mxu0 0.0
    %174 = vmatpush1.msra.mxu0 0.0
    %175 = vmatprep.subr.mxu0 0.0
    %176 = vmatpush1.msra.mxu0 0.0
    %177 = vmatprep.subr.mxu0 0.0
    %178 = vmatpush1.msra.mxu0 0.0
    %179 = vmatprep.subr.mxu0 0.0
    %180 = vmatpush1.msra.mxu0 0.0
    %181 = vmatprep.subr.mxu0 0.0
    %182 = vmatpush1.msra.mxu0 0.0
    %183 = vmatprep.subr.mxu0 0.0
    %184 = vmatpush1.msra.mxu0 0.0
    %185 = vmatprep.subr.mxu0 0.0
    %186 = vmatpush1.msra.mxu0 %v74
    %187 = vmatprep.subr.mxu0 0.0
    %188 = vmatpush2.msra.mxu0 0.0
    %189 = vmatprep.subr.mxu0 0.0
    %190 = vmatpush2.msra.mxu0 0.0
    %191 = vmatprep.subr.mxu0 0.0
    %192 = vmatpush2.msra.mxu0 0.0
    %193 = vmatprep.subr.mxu0 0.0
    %194 = vmatpush2.msra.mxu0 0.0
    %195 = vmatprep.subr.mxu0 0.0
    %196 = vmatpush2.msra.mxu0 0.0
    %197 = vmatprep.subr.mxu0 0.0
    %198 = vmatpush2.msra.mxu0 0.0
    %199 = vmatprep.subr.mxu0 0.0
    %200 = vmatpush2.msra.mxu0 0.0
    %201 = vmatprep.subr.mxu0 0.0
    %202 = vmatpush2.msra.mxu0 0.0
    %203 = vmatprep.subr.mxu0 0.0
    %204 = vmatpush2.msra.mxu0 0.0
    %205 = vmatprep.subr.mxu0 0.0
    %206 = vmatpush2.msra.mxu0 0.0
    %207 = vmatprep.subr.mxu0 0.0
    %208 = vmatpush2.msra.mxu0 0.0
    %209 = vmatprep.subr.mxu0 0.0
    %210 = vmatpush2.msra.mxu0 0.0
    %211 = vmatprep.subr.mxu0 0.0
    %212 = vmatpush2.msra.mxu0 0.0
    %213 = vmatprep.subr.mxu0 0.0
    %214 = vmatpush2.msra.mxu0 0.0
    %215 = vmatprep.subr.mxu0 0.0
    %216 = vmatpush2.msra.mxu0 0.0
    %217 = vmatprep.subr.mxu0 0.0
    %218 = vmatpush2.msra.mxu0 0.0
    %219 = vmatprep.mubr.f32.mxu0 0.0
    %220 = vmatmul.mubr.f32.gmra.mxu0 %v153
    %v221 = vpop.f32.mrf.mxu0
    %v222 = vadd.f32 1.0, %v221
    %v223 = vpop.f32.mrf.mxu0
    %224 = vdwg.mxu0
    %v225 = vmul.f32 %v56, %v56
    %v226 = vmul.f32 %v57, %v57
    %vm227 = vcmask 261120
    %v228 = vsel %vm227, %v225, 0.0
    %229 = vadd.xlane.f32.xlu0 %v228
    %v230 = vpop.xlane.xlu0 %229
    %v231 = vsel %vm227, %v226, 0.0
    %232 = vadd.xlane.f32.xlu0 %v231
    %v233 = vpop.xlane.xlu0 %232
    %v234 = vmax.f32 %v230, 1e-24
    %v235 = vmax.f32 %v233, 1e-24
    %v236 = vrsqrt.pop %v234
    %v237 = vrsqrt.pop %v235
    %v238 = vmul.f32 %v56, %v236
    %v239 = vmul.f32 %v57, %v237
    %v240 = vmul.f32 %v59, %v59
    %v241 = vmul.f32 %v60, %v60
    %v242 = vsel %vm227, %v240, 0.0
    %243 = vadd.xlane.f32.xlu0 %v242
    %v244 = vpop.xlane.xlu0 %243
    %v245 = vsel %vm227, %v241, 0.0
    %246 = vadd.xlane.f32.xlu0 %v245
    %v247 = vpop.xlane.xlu0 %246
    %v248 = vmax.f32 %v244, 1e-24
    %v249 = vmax.f32 %v247, 1e-24
    %v250 = vrsqrt.pop %v248
    %v251 = vrsqrt.pop %v249
    %v252 = vmul.f32 %v59, %v250
    %v253 = vmul.f32 %v60, %v251
    %v254 = vmul.f32 %v58, %v58
    %v255 = vsel %vm227, %v254, 0.0
    %256 = vadd.xlane.f32.xlu0 %v255
    %v257 = vpop.xlane.xlu0 %256
    %v258 = vmax.f32 %v257, 1e-24
    %v259 = vrsqrt.pop %v258
    %v260 = vmul.f32 %v58, %v259
    %v261 = vmul.f32 %v61, %v61
    %v262 = vsel %vm227, %v261, 0.0
    %263 = vadd.xlane.f32.xlu0 %v262
    %v264 = vpop.xlane.xlu0 %263
    %v265 = vmax.f32 %v264, 1e-24
    %v266 = vrsqrt.pop %v265
    %v267 = vmul.f32 %v61, %v266
    %vm268 = vcmask 64512
    %v270 = vsel %vm268, %v51, 0
    %v273 = vsel %vm268, %v52, 0
    %275 = vmatprep.subr.mxu0 0.0
    %276 = vmatpush1.msra.mxu0 0.0
    %277 = vmatprep.subr.mxu0 0.0
    %278 = vmatpush1.msra.mxu0 0.0
    %279 = vmatprep.subr.mxu0 0.0
    %280 = vmatpush1.msra.mxu0 0.0
    %281 = vmatprep.subr.mxu0 0.0
    %282 = vmatpush1.msra.mxu0 0.0
    %283 = vmatprep.subr.mxu0 0.0
    %284 = vmatpush1.msra.mxu0 0.0
    %285 = vmatprep.subr.mxu0 0.0
    %286 = vmatpush1.msra.mxu0 0.0
    %287 = vmatprep.subr.mxu0 0.0
    %288 = vmatpush1.msra.mxu0 0.0
    %289 = vmatprep.subr.mxu0 0.0
    %290 = vmatpush1.msra.mxu0 0.0
    %291 = vmatprep.subr.mxu0 0.0
    %292 = vmatpush1.msra.mxu0 0.0
    %293 = vmatprep.subr.mxu0 0.0
    %294 = vmatpush1.msra.mxu0 0.0
    %295 = vmatprep.subr.mxu0 0.0
    %296 = vmatpush1.msra.mxu0 0.0
    %297 = vmatprep.subr.mxu0 0.0
    %298 = vmatpush1.msra.mxu0 0.0
    %299 = vmatprep.subr.mxu0 0.0
    %300 = vmatpush1.msra.mxu0 0.0
    %301 = vmatprep.subr.mxu0 0.0
    %302 = vmatpush1.msra.mxu0 0.0
    %303 = vmatprep.subr.mxu0 0.0
    %304 = vmatpush1.msra.mxu0 0.0
    %305 = vmatprep.subr.mxu0 0.0
    %306 = vmatpush1.msra.mxu0 %v58
    %307 = vmatprep.subr.mxu0 0.0
    %308 = vmatpush2.msra.mxu0 0.0
    %309 = vmatprep.subr.mxu0 0.0
    %310 = vmatpush2.msra.mxu0 0.0
    %311 = vmatprep.subr.mxu0 0.0
    %312 = vmatpush2.msra.mxu0 0.0
    %313 = vmatprep.subr.mxu0 0.0
    %314 = vmatpush2.msra.mxu0 0.0
    %315 = vmatprep.subr.mxu0 0.0
    %316 = vmatpush2.msra.mxu0 0.0
    %317 = vmatprep.subr.mxu0 0.0
    %318 = vmatpush2.msra.mxu0 0.0
    %319 = vmatprep.subr.mxu0 0.0
    %320 = vmatpush2.msra.mxu0 0.0
    %321 = vmatprep.subr.mxu0 0.0
    %322 = vmatpush2.msra.mxu0 0.0
    %323 = vmatprep.subr.mxu0 0.0
    %324 = vmatpush2.msra.mxu0 0.0
    %325 = vmatprep.subr.mxu0 0.0
    %326 = vmatpush2.msra.mxu0 0.0
    %327 = vmatprep.subr.mxu0 0.0
    %328 = vmatpush2.msra.mxu0 0.0
    %329 = vmatprep.subr.mxu0 0.0
    %330 = vmatpush2.msra.mxu0 0.0
    %331 = vmatprep.subr.mxu0 0.0
    %332 = vmatpush2.msra.mxu0 0.0
    %333 = vmatprep.subr.mxu0 0.0
    %334 = vmatpush2.msra.mxu0 0.0
    %335 = vmatprep.subr.mxu0 0.0
    %336 = vmatpush2.msra.mxu0 0.0
    %337 = vmatprep.subr.mxu0 0.0
    %338 = vmatpush2.msra.mxu0 0.0
    %339 = vmatprep.mubr.f32.mxu0 0.0
    %340 = vmatmul.mubr.f32.gmra.mxu0 %v270
    %v341 = vpop.f32.mrf.mxu0
    %v342 = vadd.f32 0.0, %v341
    %v343 = vpop.f32.mrf.mxu0
    %344 = vmatprep.mubr.f32.mxu0 0.0
    %345 = vmatmul.mubr.f32.gmra.mxu0 %v273
    %v346 = vpop.f32.mrf.mxu0
    %v347 = vadd.f32 0.0, %v346
    %v348 = vpop.f32.mrf.mxu0
    %349 = vdwg.mxu0
    %v350 = vmul.f32 %v342, %v143
    %v351 = vmul.f32 %v347, %v148
    %352 = vxpose.xlu0.b32.start [1/16] %v51, 128
    %353 = vxpose.xlu0.b32.cont [2/16] %v52, 128
    %354 = vxpose.xlu0.b32.cont [3/16] 0.0, 128
    %355 = vxpose.xlu0.b32.cont [4/16] 0.0, 128
    %356 = vxpose.xlu0.b32.cont [5/16] 0.0, 128
    %357 = vxpose.xlu0.b32.cont [6/16] 0.0, 128
    %358 = vxpose.xlu0.b32.cont [7/16] 0.0, 128
    %359 = vxpose.xlu0.b32.cont [8/16] 0.0, 128
    %360 = vxpose.xlu0.b32.cont [9/16] 0.0, 128
    %361 = vxpose.xlu0.b32.cont [10/16] 0.0, 128
    %362 = vxpose.xlu0.b32.cont [11/16] 0.0, 128
    %363 = vxpose.xlu0.b32.cont [12/16] 0.0, 128
    %364 = vxpose.xlu0.b32.cont [13/16] 0.0, 128
    %365 = vxpose.xlu0.b32.cont [14/16] 0.0, 128
    %366 = vxpose.xlu0.b32.cont [15/16] 0.0, 128
    %367 = vxpose.xlu0.b32.end [16/16] 0.0, 128
    %v368 = vpop.trf.xlu0
    %v369 = vpop.trf.xlu0
    %v370 = vpop.trf.xlu0
    %v371 = vpop.trf.xlu0
    %v372 = vpop.trf.xlu0
    %v373 = vpop.trf.xlu0
    %v374 = vpop.trf.xlu0
    %v375 = vpop.trf.xlu0
    %v376 = vpop.trf.xlu0
    %v377 = vpop.trf.xlu0
    %v378 = vpop.trf.xlu0
    %v379 = vpop.trf.xlu0
    %v380 = vpop.trf.xlu0
    %v381 = vpop.trf.xlu0
    %v382 = vpop.trf.xlu0
    %v383 = vpop.trf.xlu0
    %vm384 = vcmask 130048
    %v386 = vsel %vm384, %v368, 0
    %388 = vmatprep.subr.mxu0 0.0
    %389 = vmatpush1.msra.mxu0 0.0
    %390 = vmatprep.subr.mxu0 0.0
    %391 = vmatpush1.msra.mxu0 0.0
    %392 = vmatprep.subr.mxu0 0.0
    %393 = vmatpush1.msra.mxu0 0.0
    %394 = vmatprep.subr.mxu0 0.0
    %395 = vmatpush1.msra.mxu0 0.0
    %396 = vmatprep.subr.mxu0 0.0
    %397 = vmatpush1.msra.mxu0 0.0
    %398 = vmatprep.subr.mxu0 0.0
    %399 = vmatpush1.msra.mxu0 0.0
    %400 = vmatprep.subr.mxu0 0.0
    %401 = vmatpush1.msra.mxu0 0.0
    %402 = vmatprep.subr.mxu0 0.0
    %403 = vmatpush1.msra.mxu0 0.0
    %404 = vmatprep.subr.mxu0 0.0
    %405 = vmatpush1.msra.mxu0 0.0
    %406 = vmatprep.subr.mxu0 0.0
    %407 = vmatpush1.msra.mxu0 0.0
    %408 = vmatprep.subr.mxu0 0.0
    %409 = vmatpush1.msra.mxu0 0.0
    %410 = vmatprep.subr.mxu0 0.0
    %411 = vmatpush1.msra.mxu0 0.0
    %412 = vmatprep.subr.mxu0 0.0
    %413 = vmatpush1.msra.mxu0 0.0
    %414 = vmatprep.subr.mxu0 0.0
    %415 = vmatpush1.msra.mxu0 0.0
    %416 = vmatprep.subr.mxu0 0.0
    %417 = vmatpush1.msra.mxu0 %v57
    %418 = vmatprep.subr.mxu0 0.0
    %419 = vmatpush1.msra.mxu0 %v56
    %420 = vmatprep.subr.mxu0 0.0
    %421 = vmatpush2.msra.mxu0 0.0
    %422 = vmatprep.subr.mxu0 0.0
    %423 = vmatpush2.msra.mxu0 0.0
    %424 = vmatprep.subr.mxu0 0.0
    %425 = vmatpush2.msra.mxu0 0.0
    %426 = vmatprep.subr.mxu0 0.0
    %427 = vmatpush2.msra.mxu0 0.0
    %428 = vmatprep.subr.mxu0 0.0
    %429 = vmatpush2.msra.mxu0 0.0
    %430 = vmatprep.subr.mxu0 0.0
    %431 = vmatpush2.msra.mxu0 0.0
    %432 = vmatprep.subr.mxu0 0.0
    %433 = vmatpush2.msra.mxu0 0.0
    %434 = vmatprep.subr.mxu0 0.0
    %435 = vmatpush2.msra.mxu0 0.0
    %436 = vmatprep.subr.mxu0 0.0
    %437 = vmatpush2.msra.mxu0 0.0
    %438 = vmatprep.subr.mxu0 0.0
    %439 = vmatpush2.msra.mxu0 0.0
    %440 = vmatprep.subr.mxu0 0.0
    %441 = vmatpush2.msra.mxu0 0.0
    %442 = vmatprep.subr.mxu0 0.0
    %443 = vmatpush2.msra.mxu0 0.0
    %444 = vmatprep.subr.mxu0 0.0
    %445 = vmatpush2.msra.mxu0 0.0
    %446 = vmatprep.subr.mxu0 0.0
    %447 = vmatpush2.msra.mxu0 0.0
    %448 = vmatprep.subr.mxu0 0.0
    %449 = vmatpush2.msra.mxu0 0.0
    %450 = vmatprep.subr.mxu0 0.0
    %451 = vmatpush2.msra.mxu0 0.0
    %452 = vmatprep.mubr.f32.mxu0 0.0
    %453 = vmatmul.mubr.f32.gmra.mxu0 %v386
    %v454 = vpop.f32.mrf.mxu0
    %v455 = vadd.f32 0.0, %v454
    %v456 = vpop.f32.mrf.mxu0
    %457 = vdwg.mxu0
    %v458 = vmul.f32 %v455, %v222
    %v460 = vsel %vm384, %v53, 0
    %v463 = vsel %vm384, %v54, 0
    %465 = vmatprep.subr.mxu0 0.0
    %466 = vmatpush1.msra.mxu0 0.0
    %467 = vmatprep.subr.mxu0 0.0
    %468 = vmatpush1.msra.mxu0 0.0
    %469 = vmatprep.subr.mxu0 0.0
    %470 = vmatpush1.msra.mxu0 0.0
    %471 = vmatprep.subr.mxu0 0.0
    %472 = vmatpush1.msra.mxu0 0.0
    %473 = vmatprep.subr.mxu0 0.0
    %474 = vmatpush1.msra.mxu0 0.0
    %475 = vmatprep.subr.mxu0 0.0
    %476 = vmatpush1.msra.mxu0 0.0
    %477 = vmatprep.subr.mxu0 0.0
    %478 = vmatpush1.msra.mxu0 0.0
    %479 = vmatprep.subr.mxu0 0.0
    %480 = vmatpush1.msra.mxu0 0.0
    %481 = vmatprep.subr.mxu0 0.0
    %482 = vmatpush1.msra.mxu0 0.0
    %483 = vmatprep.subr.mxu0 0.0
    %484 = vmatpush1.msra.mxu0 0.0
    %485 = vmatprep.subr.mxu0 0.0
    %486 = vmatpush1.msra.mxu0 0.0
    %487 = vmatprep.subr.mxu0 0.0
    %488 = vmatpush1.msra.mxu0 0.0
    %489 = vmatprep.subr.mxu0 0.0
    %490 = vmatpush1.msra.mxu0 0.0
    %491 = vmatprep.subr.mxu0 0.0
    %492 = vmatpush1.msra.mxu0 0.0
    %493 = vmatprep.subr.mxu0 0.0
    %494 = vmatpush1.msra.mxu0 %v60
    %495 = vmatprep.subr.mxu0 0.0
    %496 = vmatpush1.msra.mxu0 %v59
    %497 = vmatprep.subr.mxu0 0.0
    %498 = vmatpush2.msra.mxu0 0.0
    %499 = vmatprep.subr.mxu0 0.0
    %500 = vmatpush2.msra.mxu0 0.0
    %501 = vmatprep.subr.mxu0 0.0
    %502 = vmatpush2.msra.mxu0 0.0
    %503 = vmatprep.subr.mxu0 0.0
    %504 = vmatpush2.msra.mxu0 0.0
    %505 = vmatprep.subr.mxu0 0.0
    %506 = vmatpush2.msra.mxu0 0.0
    %507 = vmatprep.subr.mxu0 0.0
    %508 = vmatpush2.msra.mxu0 0.0
    %509 = vmatprep.subr.mxu0 0.0
    %510 = vmatpush2.msra.mxu0 0.0
    %511 = vmatprep.subr.mxu0 0.0
    %512 = vmatpush2.msra.mxu0 0.0
    %513 = vmatprep.subr.mxu0 0.0
    %514 = vmatpush2.msra.mxu0 0.0
    %515 = vmatprep.subr.mxu0 0.0
    %516 = vmatpush2.msra.mxu0 0.0
    %517 = vmatprep.subr.mxu0 0.0
    %518 = vmatpush2.msra.mxu0 0.0
    %519 = vmatprep.subr.mxu0 0.0
    %520 = vmatpush2.msra.mxu0 0.0
    %521 = vmatprep.subr.mxu0 0.0
    %522 = vmatpush2.msra.mxu0 0.0
    %523 = vmatprep.subr.mxu0 0.0
    %524 = vmatpush2.msra.mxu0 0.0
    %525 = vmatprep.subr.mxu0 0.0
    %526 = vmatpush2.msra.mxu0 0.0
    %527 = vmatprep.subr.mxu0 0.0
    %528 = vmatpush2.msra.mxu0 0.0
    %529 = vmatprep.mubr.f32.mxu0 0.0
    %530 = vmatmul.mubr.f32.gmra.mxu0 %v460
    %v531 = vpop.f32.mrf.mxu0
    %v532 = vadd.f32 0.0, %v531
    %v533 = vpop.f32.mrf.mxu0
    %534 = vmatprep.mubr.f32.mxu0 0.0
    %535 = vmatmul.mubr.f32.gmra.mxu0 %v463
    %v536 = vpop.f32.mrf.mxu0
    %v537 = vadd.f32 0.0, %v536
    %v538 = vpop.f32.mrf.mxu0
    %539 = vdwg.mxu0
    %v541 = vsel %vm268, %v55, 0
    %543 = vmatprep.subr.mxu0 0.0
    %544 = vmatpush1.msra.mxu0 0.0
    %545 = vmatprep.subr.mxu0 0.0
    %546 = vmatpush1.msra.mxu0 0.0
    %547 = vmatprep.subr.mxu0 0.0
    %548 = vmatpush1.msra.mxu0 0.0
    %549 = vmatprep.subr.mxu0 0.0
    %550 = vmatpush1.msra.mxu0 0.0
    %551 = vmatprep.subr.mxu0 0.0
    %552 = vmatpush1.msra.mxu0 0.0
    %553 = vmatprep.subr.mxu0 0.0
    %554 = vmatpush1.msra.mxu0 0.0
    %555 = vmatprep.subr.mxu0 0.0
    %556 = vmatpush1.msra.mxu0 0.0
    %557 = vmatprep.subr.mxu0 0.0
    %558 = vmatpush1.msra.mxu0 0.0
    %559 = vmatprep.subr.mxu0 0.0
    %560 = vmatpush1.msra.mxu0 0.0
    %561 = vmatprep.subr.mxu0 0.0
    %562 = vmatpush1.msra.mxu0 0.0
    %563 = vmatprep.subr.mxu0 0.0
    %564 = vmatpush1.msra.mxu0 0.0
    %565 = vmatprep.subr.mxu0 0.0
    %566 = vmatpush1.msra.mxu0 0.0
    %567 = vmatprep.subr.mxu0 0.0
    %568 = vmatpush1.msra.mxu0 0.0
    %569 = vmatprep.subr.mxu0 0.0
    %570 = vmatpush1.msra.mxu0 0.0
    %571 = vmatprep.subr.mxu0 0.0
    %572 = vmatpush1.msra.mxu0 0.0
    %573 = vmatprep.subr.mxu0 0.0
    %574 = vmatpush1.msra.mxu0 %v61
    %575 = vmatprep.subr.mxu0 0.0
    %576 = vmatpush2.msra.mxu0 0.0
    %577 = vmatprep.subr.mxu0 0.0
    %578 = vmatpush2.msra.mxu0 0.0
    %579 = vmatprep.subr.mxu0 0.0
    %580 = vmatpush2.msra.mxu0 0.0
    %581 = vmatprep.subr.mxu0 0.0
    %582 = vmatpush2.msra.mxu0 0.0
    %583 = vmatprep.subr.mxu0 0.0
    %584 = vmatpush2.msra.mxu0 0.0
    %585 = vmatprep.subr.mxu0 0.0
    %586 = vmatpush2.msra.mxu0 0.0
    %587 = vmatprep.subr.mxu0 0.0
    %588 = vmatpush2.msra.mxu0 0.0
    %589 = vmatprep.subr.mxu0 0.0
    %590 = vmatpush2.msra.mxu0 0.0
    %591 = vmatprep.subr.mxu0 0.0
    %592 = vmatpush2.msra.mxu0 0.0
    %593 = vmatprep.subr.mxu0 0.0
    %594 = vmatpush2.msra.mxu0 0.0
    %595 = vmatprep.subr.mxu0 0.0
    %596 = vmatpush2.msra.mxu0 0.0
    %597 = vmatprep.subr.mxu0 0.0
    %598 = vmatpush2.msra.mxu0 0.0
    %599 = vmatprep.subr.mxu0 0.0
    %600 = vmatpush2.msra.mxu0 0.0
    %601 = vmatprep.subr.mxu0 0.0
    %602 = vmatpush2.msra.mxu0 0.0
    %603 = vmatprep.subr.mxu0 0.0
    %604 = vmatpush2.msra.mxu0 0.0
    %605 = vmatprep.subr.mxu0 0.0
    %606 = vmatpush2.msra.mxu0 0.0
    %607 = vmatprep.mubr.f32.mxu0 0.0
    %608 = vmatmul.mubr.f32.gmra.mxu0 %v541
    %v609 = vpop.f32.mrf.mxu0
    %v610 = vadd.f32 0.0, %v609
    %v611 = vpop.f32.mrf.mxu0
    %612 = vdwg.mxu0
    %v613 = vmul.f32 %v350, %v350
    %v614 = vmul.f32 %v351, %v351
    %v615 = vsel %vm227, %v613, 0.0
    %616 = vadd.xlane.f32.xlu0 %v615
    %v617 = vpop.xlane.xlu0 %616
    %v618 = vsel %vm227, %v614, 0.0
    %619 = vadd.xlane.f32.xlu0 %v618
    %v620 = vpop.xlane.xlu0 %619
    %v621 = vmax.f32 %v617, 1e-24
    %v622 = vmax.f32 %v620, 1e-24
    %v623 = vrsqrt.pop %v621
    %v624 = vrsqrt.pop %v622
    %v625 = vmul.f32 %v350, %v623
    %v626 = vmul.f32 %v351, %v624
    %v627 = vmul.f32 %v532, %v532
    %v628 = vmul.f32 %v537, %v537
    %v629 = vsel %vm227, %v627, 0.0
    %630 = vadd.xlane.f32.xlu0 %v629
    %v631 = vpop.xlane.xlu0 %630
    %v632 = vsel %vm227, %v628, 0.0
    %633 = vadd.xlane.f32.xlu0 %v632
    %v634 = vpop.xlane.xlu0 %633
    %v635 = vmax.f32 %v631, 1e-24
    %v636 = vmax.f32 %v634, 1e-24
    %v637 = vrsqrt.pop %v635
    %v638 = vrsqrt.pop %v636
    %v639 = vmul.f32 %v532, %v637
    %v640 = vmul.f32 %v537, %v638
    %v641 = vmul.f32 %v458, %v458
    %v642 = vsel %vm227, %v641, 0.0
    %643 = vadd.xlane.f32.xlu0 %v642
    %v644 = vpop.xlane.xlu0 %643
    %v645 = vmax.f32 %v644, 1e-24
    %v646 = vrsqrt.pop %v645
    %v647 = vmul.f32 %v458, %v646
    %v648 = vmul.f32 %v610, %v610
    %v649 = vsel %vm227, %v648, 0.0
    %650 = vadd.xlane.f32.xlu0 %v649
    %v651 = vpop.xlane.xlu0 %650
    %v652 = vmax.f32 %v651, 1e-24
    %v653 = vrsqrt.pop %v652
    %v654 = vmul.f32 %v610, %v653
    %655 = vmatprep.subr.mxu0 0.0
    %656 = vmatpush1.msra.mxu0 0.0
    %657 = vmatprep.subr.mxu0 0.0
    %658 = vmatpush1.msra.mxu0 0.0
    %659 = vmatprep.subr.mxu0 0.0
    %660 = vmatpush1.msra.mxu0 0.0
    %661 = vmatprep.subr.mxu0 0.0
    %662 = vmatpush1.msra.mxu0 0.0
    %663 = vmatprep.subr.mxu0 0.0
    %664 = vmatpush1.msra.mxu0 0.0
    %665 = vmatprep.subr.mxu0 0.0
    %666 = vmatpush1.msra.mxu0 0.0
    %667 = vmatprep.subr.mxu0 0.0
    %668 = vmatpush1.msra.mxu0 0.0
    %669 = vmatprep.subr.mxu0 0.0
    %670 = vmatpush1.msra.mxu0 0.0
    %671 = vmatprep.subr.mxu0 0.0
    %672 = vmatpush1.msra.mxu0 0.0
    %673 = vmatprep.subr.mxu0 0.0
    %674 = vmatpush1.msra.mxu0 0.0
    %675 = vmatprep.subr.mxu0 0.0
    %676 = vmatpush1.msra.mxu0 0.0
    %677 = vmatprep.subr.mxu0 0.0
    %678 = vmatpush1.msra.mxu0 0.0
    %679 = vmatprep.subr.mxu0 0.0
    %680 = vmatpush1.msra.mxu0 0.0
    %681 = vmatprep.subr.mxu0 0.0
    %682 = vmatpush1.msra.mxu0 0.0
    %683 = vmatprep.subr.mxu0 0.0
    %684 = vmatpush1.msra.mxu0 0.0
    %685 = vmatprep.subr.mxu0 0.0
    %686 = vmatpush1.msra.mxu0 %v458
    %687 = vmatprep.subr.mxu0 0.0
    %688 = vmatpush2.msra.mxu0 0.0
    %689 = vmatprep.subr.mxu0 0.0
    %690 = vmatpush2.msra.mxu0 0.0
    %691 = vmatprep.subr.mxu0 0.0
    %692 = vmatpush2.msra.mxu0 0.0
    %693 = vmatprep.subr.mxu0 0.0
    %694 = vmatpush2.msra.mxu0 0.0
    %695 = vmatprep.subr.mxu0 0.0
    %696 = vmatpush2.msra.mxu0 0.0
    %697 = vmatprep.subr.mxu0 0.0
    %698 = vmatpush2.msra.mxu0 0.0
    %699 = vmatprep.subr.mxu0 0.0
    %700 = vmatpush2.msra.mxu0 0.0
    %701 = vmatprep.subr.mxu0 0.0
    %702 = vmatpush2.msra.mxu0 0.0
    %703 = vmatprep.subr.mxu0 0.0
    %704 = vmatpush2.msra.mxu0 0.0
    %705 = vmatprep.subr.mxu0 0.0
    %706 = vmatpush2.msra.mxu0 0.0
    %707 = vmatprep.subr.mxu0 0.0
    %708 = vmatpush2.msra.mxu0 0.0
    %709 = vmatprep.subr.mxu0 0.0
    %710 = vmatpush2.msra.mxu0 0.0
    %711 = vmatprep.subr.mxu0 0.0
    %712 = vmatpush2.msra.mxu0 0.0
    %713 = vmatprep.subr.mxu0 0.0
    %714 = vmatpush2.msra.mxu0 0.0
    %715 = vmatprep.subr.mxu0 0.0
    %716 = vmatpush2.msra.mxu0 0.0
    %717 = vmatprep.subr.mxu0 0.0
    %718 = vmatpush2.msra.mxu0 0.0
    %719 = vmatprep.mubr.f32.mxu0 0.0
    %720 = vmatmul.mubr.f32.gmra.mxu0 %v270
    %v721 = vpop.f32.mrf.mxu0
    %v722 = vadd.f32 0.0, %v721
    %v723 = vpop.f32.mrf.mxu0
    %724 = vmatprep.mubr.f32.mxu0 0.0
    %725 = vmatmul.mubr.f32.gmra.mxu0 %v273
    %v726 = vpop.f32.mrf.mxu0
    %v727 = vadd.f32 0.0, %v726
    %v728 = vpop.f32.mrf.mxu0
    %729 = vdwg.mxu0
    %v730 = vmul.f32 %v722, %v143
    %v731 = vmul.f32 %v727, %v148
    %732 = vmatprep.subr.mxu0 0.0
    %733 = vmatpush1.msra.mxu0 0.0
    %734 = vmatprep.subr.mxu0 0.0
    %735 = vmatpush1.msra.mxu0 0.0
    %736 = vmatprep.subr.mxu0 0.0
    %737 = vmatpush1.msra.mxu0 0.0
    %738 = vmatprep.subr.mxu0 0.0
    %739 = vmatpush1.msra.mxu0 0.0
    %740 = vmatprep.subr.mxu0 0.0
    %741 = vmatpush1.msra.mxu0 0.0
    %742 = vmatprep.subr.mxu0 0.0
    %743 = vmatpush1.msra.mxu0 0.0
    %744 = vmatprep.subr.mxu0 0.0
    %745 = vmatpush1.msra.mxu0 0.0
    %746 = vmatprep.subr.mxu0 0.0
    %747 = vmatpush1.msra.mxu0 0.0
    %748 = vmatprep.subr.mxu0 0.0
    %749 = vmatpush1.msra.mxu0 0.0
    %750 = vmatprep.subr.mxu0 0.0
    %751 = vmatpush1.msra.mxu0 0.0
    %752 = vmatprep.subr.mxu0 0.0
    %753 = vmatpush1.msra.mxu0 0.0
    %754 = vmatprep.subr.mxu0 0.0
    %755 = vmatpush1.msra.mxu0 0.0
    %756 = vmatprep.subr.mxu0 0.0
    %757 = vmatpush1.msra.mxu0 0.0
    %758 = vmatprep.subr.mxu0 0.0
    %759 = vmatpush1.msra.mxu0 0.0
    %760 = vmatprep.subr.mxu0 0.0
    %761 = vmatpush1.msra.mxu0 %v351
    %762 = vmatprep.subr.mxu0 0.0
    %763 = vmatpush1.msra.mxu0 %v350
    %764 = vmatprep.subr.mxu0 0.0
    %765 = vmatpush2.msra.mxu0 0.0
    %766 = vmatprep.subr.mxu0 0.0
    %767 = vmatpush2.msra.mxu0 0.0
    %768 = vmatprep.subr.mxu0 0.0
    %769 = vmatpush2.msra.mxu0 0.0
    %770 = vmatprep.subr.mxu0 0.0
    %771 = vmatpush2.msra.mxu0 0.0
    %772 = vmatprep.subr.mxu0 0.0
    %773 = vmatpush2.msra.mxu0 0.0
    %774 = vmatprep.subr.mxu0 0.0
    %775 = vmatpush2.msra.mxu0 0.0
    %776 = vmatprep.subr.mxu0 0.0
    %777 = vmatpush2.msra.mxu0 0.0
    %778 = vmatprep.subr.mxu0 0.0
    %779 = vmatpush2.msra.mxu0 0.0
    %780 = vmatprep.subr.mxu0 0.0
    %781 = vmatpush2.msra.mxu0 0.0
    %782 = vmatprep.subr.mxu0 0.0
    %783 = vmatpush2.msra.mxu0 0.0
    %784 = vmatprep.subr.mxu0 0.0
    %785 = vmatpush2.msra.mxu0 0.0
    %786 = vmatprep.subr.mxu0 0.0
    %787 = vmatpush2.msra.mxu0 0.0
    %788 = vmatprep.subr.mxu0 0.0
    %789 = vmatpush2.msra.mxu0 0.0
    %790 = vmatprep.subr.mxu0 0.0
    %791 = vmatpush2.msra.mxu0 0.0
    %792 = vmatprep.subr.mxu0 0.0
    %793 = vmatpush2.msra.mxu0 0.0
    %794 = vmatprep.subr.mxu0 0.0
    %795 = vmatpush2.msra.mxu0 0.0
    %796 = vmatprep.mubr.f32.mxu0 0.0
    %797 = vmatmul.mubr.f32.gmra.mxu0 %v386
    %v798 = vpop.f32.mrf.mxu0
    %v799 = vadd.f32 0.0, %v798
    %v800 = vpop.f32.mrf.mxu0
    %801 = vdwg.mxu0
    %v802 = vmul.f32 %v799, %v222
    %803 = vmatprep.subr.mxu0 0.0
    %804 = vmatpush1.msra.mxu0 0.0
    %805 = vmatprep.subr.mxu0 0.0
    %806 = vmatpush1.msra.mxu0 0.0
    %807 = vmatprep.subr.mxu0 0.0
    %808 = vmatpush1.msra.mxu0 0.0
    %809 = vmatprep.subr.mxu0 0.0
    %810 = vmatpush1.msra.mxu0 0.0
    %811 = vmatprep.subr.mxu0 0.0
    %812 = vmatpush1.msra.mxu0 0.0
    %813 = vmatprep.subr.mxu0 0.0
    %814 = vmatpush1.msra.mxu0 0.0
    %815 = vmatprep.subr.mxu0 0.0
    %816 = vmatpush1.msra.mxu0 0.0
    %817 = vmatprep.subr.mxu0 0.0
    %818 = vmatpush1.msra.mxu0 0.0
    %819 = vmatprep.subr.mxu0 0.0
    %820 = vmatpush1.msra.mxu0 0.0
    %821 = vmatprep.subr.mxu0 0.0
    %822 = vmatpush1.msra.mxu0 0.0
    %823 = vmatprep.subr.mxu0 0.0
    %824 = vmatpush1.msra.mxu0 0.0
    %825 = vmatprep.subr.mxu0 0.0
    %826 = vmatpush1.msra.mxu0 0.0
    %827 = vmatprep.subr.mxu0 0.0
    %828 = vmatpush1.msra.mxu0 0.0
    %829 = vmatprep.subr.mxu0 0.0
    %830 = vmatpush1.msra.mxu0 0.0
    %831 = vmatprep.subr.mxu0 0.0
    %832 = vmatpush1.msra.mxu0 %v537
    %833 = vmatprep.subr.mxu0 0.0
    %834 = vmatpush1.msra.mxu0 %v532
    %835 = vmatprep.subr.mxu0 0.0
    %836 = vmatpush2.msra.mxu0 0.0
    %837 = vmatprep.subr.mxu0 0.0
    %838 = vmatpush2.msra.mxu0 0.0
    %839 = vmatprep.subr.mxu0 0.0
    %840 = vmatpush2.msra.mxu0 0.0
    %841 = vmatprep.subr.mxu0 0.0
    %842 = vmatpush2.msra.mxu0 0.0
    %843 = vmatprep.subr.mxu0 0.0
    %844 = vmatpush2.msra.mxu0 0.0
    %845 = vmatprep.subr.mxu0 0.0
    %846 = vmatpush2.msra.mxu0 0.0
    %847 = vmatprep.subr.mxu0 0.0
    %848 = vmatpush2.msra.mxu0 0.0
    %849 = vmatprep.subr.mxu0 0.0
    %850 = vmatpush2.msra.mxu0 0.0
    %851 = vmatprep.subr.mxu0 0.0
    %852 = vmatpush2.msra.mxu0 0.0
    %853 = vmatprep.subr.mxu0 0.0
    %854 = vmatpush2.msra.mxu0 0.0
    %855 = vmatprep.subr.mxu0 0.0
    %856 = vmatpush2.msra.mxu0 0.0
    %857 = vmatprep.subr.mxu0 0.0
    %858 = vmatpush2.msra.mxu0 0.0
    %859 = vmatprep.subr.mxu0 0.0
    %860 = vmatpush2.msra.mxu0 0.0
    %861 = vmatprep.subr.mxu0 0.0
    %862 = vmatpush2.msra.mxu0 0.0
    %863 = vmatprep.subr.mxu0 0.0
    %864 = vmatpush2.msra.mxu0 0.0
    %865 = vmatprep.subr.mxu0 0.0
    %866 = vmatpush2.msra.mxu0 0.0
    %867 = vmatprep.mubr.f32.mxu0 0.0
    %868 = vmatmul.mubr.f32.gmra.mxu0 %v460
    %v869 = vpop.f32.mrf.mxu0
    %v870 = vadd.f32 0.0, %v869
    %v871 = vpop.f32.mrf.mxu0
    %872 = vmatprep.mubr.f32.mxu0 0.0
    %873 = vmatmul.mubr.f32.gmra.mxu0 %v463
    %v874 = vpop.f32.mrf.mxu0
    %v875 = vadd.f32 0.0, %v874
    %v876 = vpop.f32.mrf.mxu0
    %877 = vdwg.mxu0
    %878 = vmatprep.subr.mxu0 0.0
    %879 = vmatpush1.msra.mxu0 0.0
    %880 = vmatprep.subr.mxu0 0.0
    %881 = vmatpush1.msra.mxu0 0.0
    %882 = vmatprep.subr.mxu0 0.0
    %883 = vmatpush1.msra.mxu0 0.0
    %884 = vmatprep.subr.mxu0 0.0
    %885 = vmatpush1.msra.mxu0 0.0
    %886 = vmatprep.subr.mxu0 0.0
    %887 = vmatpush1.msra.mxu0 0.0
    %888 = vmatprep.subr.mxu0 0.0
    %889 = vmatpush1.msra.mxu0 0.0
    %890 = vmatprep.subr.mxu0 0.0
    %891 = vmatpush1.msra.mxu0 0.0
    %892 = vmatprep.subr.mxu0 0.0
    %893 = vmatpush1.msra.mxu0 0.0
    %894 = vmatprep.subr.mxu0 0.0
    %895 = vmatpush1.msra.mxu0 0.0
    %896 = vmatprep.subr.mxu0 0.0
    %897 = vmatpush1.msra.mxu0 0.0
    %898 = vmatprep.subr.mxu0 0.0
    %899 = vmatpush1.msra.mxu0 0.0
    %900 = vmatprep.subr.mxu0 0.0
    %901 = vmatpush1.msra.mxu0 0.0
    %902 = vmatprep.subr.mxu0 0.0
    %903 = vmatpush1.msra.mxu0 0.0
    %904 = vmatprep.subr.mxu0 0.0
    %905 = vmatpush1.msra.mxu0 0.0
    %906 = vmatprep.subr.mxu0 0.0
    %907 = vmatpush1.msra.mxu0 0.0
    %908 = vmatprep.subr.mxu0 0.0
    %909 = vmatpush1.msra.mxu0 %v610
    %910 = vmatprep.subr.mxu0 0.0
    %911 = vmatpush2.msra.mxu0 0.0
    %912 = vmatprep.subr.mxu0 0.0
    %913 = vmatpush2.msra.mxu0 0.0
    %914 = vmatprep.subr.mxu0 0.0
    %915 = vmatpush2.msra.mxu0 0.0
    %916 = vmatprep.subr.mxu0 0.0
    %917 = vmatpush2.msra.mxu0 0.0
    %918 = vmatprep.subr.mxu0 0.0
    %919 = vmatpush2.msra.mxu0 0.0
    %920 = vmatprep.subr.mxu0 0.0
    %921 = vmatpush2.msra.mxu0 0.0
    %922 = vmatprep.subr.mxu0 0.0
    %923 = vmatpush2.msra.mxu0 0.0
    %924 = vmatprep.subr.mxu0 0.0
    %925 = vmatpush2.msra.mxu0 0.0
    %926 = vmatprep.subr.mxu0 0.0
    %927 = vmatpush2.msra.mxu0 0.0
    %928 = vmatprep.subr.mxu0 0.0
    %929 = vmatpush2.msra.mxu0 0.0
    %930 = vmatprep.subr.mxu0 0.0
    %931 = vmatpush2.msra.mxu0 0.0
    %932 = vmatprep.subr.mxu0 0.0
    %933 = vmatpush2.msra.mxu0 0.0
    %934 = vmatprep.subr.mxu0 0.0
    %935 = vmatpush2.msra.mxu0 0.0
    %936 = vmatprep.subr.mxu0 0.0
    %937 = vmatpush2.msra.mxu0 0.0
    %938 = vmatprep.subr.mxu0 0.0
    %939 = vmatpush2.msra.mxu0 0.0
    %940 = vmatprep.subr.mxu0 0.0
    %941 = vmatpush2.msra.mxu0 0.0
    %942 = vmatprep.mubr.f32.mxu0 0.0
    %943 = vmatmul.mubr.f32.gmra.mxu0 %v541
    %v944 = vpop.f32.mrf.mxu0
    %v945 = vadd.f32 0.0, %v944
    %v946 = vpop.f32.mrf.mxu0
    %947 = vdwg.mxu0
    %v948 = vmul.f32 %v730, %v730
    %v949 = vmul.f32 %v731, %v731
    %v950 = vsel %vm227, %v948, 0.0
    %951 = vadd.xlane.f32.xlu0 %v950
    %v952 = vpop.xlane.xlu0 %951
    %v953 = vsel %vm227, %v949, 0.0
    %954 = vadd.xlane.f32.xlu0 %v953
    %v955 = vpop.xlane.xlu0 %954
    %v956 = vmax.f32 %v952, 1e-24
    %v957 = vmax.f32 %v955, 1e-24
    %v958 = vrsqrt.pop %v956
    %v959 = vrsqrt.pop %v957
    %v960 = vmul.f32 %v730, %v958
    %v961 = vmul.f32 %v731, %v959
    %v962 = vmul.f32 %v870, %v870
    %v963 = vmul.f32 %v875, %v875
    %v964 = vsel %vm227, %v962, 0.0
    %965 = vadd.xlane.f32.xlu0 %v964
    %v966 = vpop.xlane.xlu0 %965
    %v967 = vsel %vm227, %v963, 0.0
    %968 = vadd.xlane.f32.xlu0 %v967
    %v969 = vpop.xlane.xlu0 %968
    %v970 = vmax.f32 %v966, 1e-24
    %v971 = vmax.f32 %v969, 1e-24
    %v972 = vrsqrt.pop %v970
    %v973 = vrsqrt.pop %v971
    %v974 = vmul.f32 %v870, %v972
    %v975 = vmul.f32 %v875, %v973
    %v976 = vmul.f32 %v802, %v802
    %v977 = vsel %vm227, %v976, 0.0
    %978 = vadd.xlane.f32.xlu0 %v977
    %v979 = vpop.xlane.xlu0 %978
    %v980 = vmax.f32 %v979, 1e-24
    %v981 = vrsqrt.pop %v980
    %v982 = vmul.f32 %v802, %v981
    %v983 = vmul.f32 %v945, %v945
    %v984 = vsel %vm227, %v983, 0.0
    %985 = vadd.xlane.f32.xlu0 %v984
    %v986 = vpop.xlane.xlu0 %985
    %v987 = vmax.f32 %v986, 1e-24
    %v988 = vrsqrt.pop %v987
    %v989 = vmul.f32 %v945, %v988
    %992 = vrot.lane.b32.xlu0 %v252, 32
    %v993 = vpop.permute.xlu0 %992
    %994 = vrot.lane.b32.xlu0 %v253, 32
    %v995 = vpop.permute.xlu0 %994
    %1000 = vrot.lane.b32.xlu0 %v625, 64
    %v1001 = vpop.permute.xlu0 %1000
    %1002 = vrot.lane.b32.xlu0 %v626, 64
    %v1003 = vpop.permute.xlu0 %1002
    %1008 = vrot.lane.b32.xlu0 %v639, 96
    %v1009 = vpop.permute.xlu0 %1008
    %1010 = vrot.lane.b32.xlu0 %v640, 96
    %v1011 = vpop.permute.xlu0 %1010
    %1016 = vrot.lane.b32.xlu0 %v974, 32
    %v1017 = vpop.permute.xlu0 %1016
    %1018 = vrot.lane.b32.xlu0 %v975, 32
    %v1019 = vpop.permute.xlu0 %1018
    %v1022 = vsel %vm227, %v238, %v993
    %v1023 = vsel %vm227, %v239, %v995
    %vm1024 = vcmask 523264
    %v1025 = vsel %vm1024, %v1022, %v1001
    %v1026 = vsel %vm1024, %v1023, %v1003
    %vm1027 = vcmask 785408
    %v1028 = vsel %vm1027, %v1025, %v1009
    %v1029 = vsel %vm1027, %v1026, %v1011
    %v1030 = vsel %vm227, %v960, %v1017
    %v1031 = vsel %vm227, %v961, %v1019
    %1032 = vst [vmem:[#allocation5] sm:$0xff] %v1028
    %1033 = vst.msk [vmem:[#allocation5 + $0x8] sm:$0xff] %vm1024, %v1030
    %1034 = vst [vmem:[#allocation5 + $0x10] sm:$0xff] %v1029
    %1035 = vst.msk [vmem:[#allocation5 + $0x18] sm:$0xff] %vm1024, %v1031
    %1037 = vrot.lane.b32.xlu0 %v267, 32
    %v1038 = vpop.permute.xlu0 %1037
    %1041 = vrot.lane.b32.xlu0 %v647, 64
    %v1042 = vpop.permute.xlu0 %1041
    %1045 = vrot.lane.b32.xlu0 %v654, 96
    %v1046 = vpop.permute.xlu0 %1045
    %1049 = vrot.lane.b32.xlu0 %v989, 32
    %v1050 = vpop.permute.xlu0 %1049
    %v1052 = vsel %vm227, %v260, %v1038
    %v1053 = vsel %vm1024, %v1052, %v1042
    %v1054 = vsel %vm1027, %v1053, %v1046
    %v1055 = vsel %vm227, %v982, %v1050
    %1056 = vst [vmem:[#allocation6] sm:$0xff] %v1054
    %1057 = vst.msk [vmem:[#allocation6 + $0x8] sm:$0xff] %vm1024, %v1055
    // Predicated region
    $region46: #{graph_conv_forward.1} parent=1 // pred_check
      _
    $region47: #{graph_conv_forward.1} parent=1 // pred_check_branch
      %1059 = sbr.rel (0) target = $region49
    $region48: #{graph_conv_forward.1} parent=1 // pred_region
      %s1061 = ssub.s32 512, 512
      %1062 = vsyncadd [#allocation4], %s1061
      %s1063 = sshll.u32 [#allocation5], 4
      %s1064 = int_to_ptr.vmem [resolvable:$true] %s1063
      %1069 = dma.vmem_to_hbm [thread:$0]  %s1064, 512, %s10, [#allocation4], 256, 256, 16
    $region49: #{graph_conv_forward.1} parent=1 // pred_fallthru
      _
    // Predicated region
    $region50: #{graph_conv_forward.1} parent=1 // pred_check
      _
    $region51: #{graph_conv_forward.1} parent=1 // pred_check_branch
      %1071 = sbr.rel (0) target = $region53
    $region52: #{graph_conv_forward.1} parent=1 // pred_region
      %s1073 = ssub.s32 256, 256
      %1074 = vsyncadd [#allocation7], %s1073
      %s1076 = sshll.u32 [#allocation6], 4
      %s1077 = int_to_ptr.vmem [resolvable:$true] %s1076
      %1079 = dma.vmem_to_hbm [thread:$0]  %s1077, 256, %s11, [#allocation7]
    $region53: #{graph_conv_forward.1} parent=1 // pred_fallthru
      _
    // Predicated region
    $region54: #{graph_conv_forward.1} parent=1 // pred_check
      _
    $region55: #{graph_conv_forward.1} parent=1 // pred_check_branch
      %1081 = sbr.rel (0) target = $region57
    $region56: #{graph_conv_forward.1} parent=1 // pred_region
      %1082 = dma.done [#allocation4], 512
    $region57: #{graph_conv_forward.1} parent=1 // pred_fallthru
      _
    // Predicated region
    $region58: #{graph_conv_forward.1} parent=1 // pred_check
      _
    $region59: #{graph_conv_forward.1} parent=1 // pred_check_branch
      %1084 = sbr.rel (0) target = $region61
    $region60: #{graph_conv_forward.1} parent=1 // pred_region
      %1085 = dma.done [#allocation7], 256
    $region61: #{graph_conv_forward.1} parent=1 // pred_fallthru
      _
    %1086 = vsyncpa [#allocation3], 1
    %1087 = vsyncpa [#allocation4], 1
    %1088 = vsyncpa [#allocation7], 1

</llo_original>
